<compile_context>
chip_gen: v6e
topology: v6e:2x2x1
jax: 0.10.0
libtpu: 0.0.40
codegen_flags: <defaults>
</compile_context>

<pallas_src>
import math
import functools

import jax
import jax.numpy as jnp
from jax.experimental import pallas as pl
from jax.experimental.pallas import tpu as pltpu


# ---------------------------------------------------------------------------
# Fast bounded-range sine.
#
# There is no hardware sine on the TPU EUP, so jnp.sin expands into a long
# VALU sequence with full range reduction.  SIREN pre-activations here are
# |y| <~ a few hundred, so a single Cody-Waite reduction modulo pi
# (r = y - round(y/pi)*pi, sign from the parity of the multiple) plus a
# degree-11 odd polynomial is accurate to ~1e-7 and cheaper.
# ---------------------------------------------------------------------------
_INV_PI = 0.3183098861837907
_PI_A = 3.140625                   # high bits of pi (exactly representable)
_PI_B = 9.676535897931160e-4       # pi - _PI_A
_S3 = -1.0 / 6.0
_S5 = 1.0 / 120.0
_S7 = -1.0 / 5040.0
_S9 = 1.0 / 362880.0
_S11 = -1.0 / 39916800.0


def _fast_sine(y):
    n = jnp.round(y * _INV_PI)                 # nearest multiple of pi
    r = y - n * _PI_A
    r = r - n * _PI_B                          # r in [-pi/2, pi/2]
    parity = n - 2.0 * jnp.floor(n * 0.5)      # n mod 2 as 0.0/1.0 (neg-safe)
    sign = 1.0 - 2.0 * parity                  # cos(n*pi) = +/-1
    r2 = r * r
    p = _S11
    p = p * r2 + _S9
    p = p * r2 + _S7
    p = p * r2 + _S5
    p = p * r2 + _S3
    return sign * (r + r * (r2 * p))


def _sine_layer_kernel(x_ref, w_ref, b_ref, o_ref, *, use_fast_sine):
    # x_ref: (C_in, TL)   -- L lane-dense
    # w_ref: (C_out, C_in)   (omega_0 already folded in)
    # b_ref: (C_out, 1)      (omega_0 already folded in)
    # o_ref: (C_out, TL)
    # Keep the (C_out, C_in) x (C_in, TL) contraction on the MXU: it rides
    # the otherwise-idle vector-extended slot; moving it to the VPU would
    # load the slot the sine already saturates.
    y = jnp.dot(w_ref[...], x_ref[...], preferred_element_type=jnp.float32)
    y = y + b_ref[...]                         # broadcast bias over lanes (L)
    s = _fast_sine(y) if use_fast_sine else jnp.sin(y)
    o_ref[...] = s.astype(o_ref.dtype)


def _choose_l_tile(L, B, max_tile=16384):
    """Pick the lane (L) tile size.

    Big tiles amortize the ~0.35 us / ~600-cycle per-grid-step overhead; the
    double-buffered per-step working set is only ~288*TL bytes (~4.7 MiB at
    TL=16384), far under v7x's 64 MiB VMEM.  Keep >= ~4 total grid points
    when L allows so v7x's two TensorCores both get work.  Returning L
    itself is legal (block dim == full array dim); otherwise TL is a
    multiple of 512 (lane-aligned) and the ragged last block is masked by
    Pallas on writeback.
    """
    if L <= 512:
        return L
    min_steps = max(1, math.ceil(4 / max(B, 1)))     # target B*num_l >= 4
    tl = math.ceil(L / min_steps)
    tl = ((tl + 511) // 512) * 512
    tl = max(512, min(tl, max_tile))
    return L if tl >= L else tl


def sine_layer_forward(x_ncl, weight, bias, omega_0=30.0, *,
                       max_l_tile=16384, out_dtype=None, use_fast_sine=True):
    """x_ncl: (B, C_in, L); weight: (C_out, C_in); bias: (C_out,).

    Returns (B, C_out, L), matching torch.sin(omega_0 * Conv1d(k=1)(x)).
    `out_dtype=jnp.bfloat16` halves the output HBM writeback (useful on v5e)
    if downstream consumers tolerate it; math stays in f32 either way.
    """
    B, C_in, L = x_ncl.shape
    C_out = weight.shape[0]
    if out_dtype is None:
        out_dtype = x_ncl.dtype

    # Fold omega_0 into the parameters once (O(C_out*C_in) work, not a pass
    # over the activations).
    w_scaled = (omega_0 * weight).astype(x_ncl.dtype)            # (C_out, C_in)
    b_scaled = (omega_0 * bias).astype(jnp.float32).reshape(C_out, 1)

    TL = _choose_l_tile(L, B, max_l_tile)
    num_l = pl.cdiv(L, TL)

    kernel = functools.partial(_sine_layer_kernel, use_fast_sine=use_fast_sine)

    out = pl.pallas_call(
        kernel,
        out_shape=jax.ShapeDtypeStruct((B, C_out, L), out_dtype),
        grid_spec=pltpu.PrefetchScalarGridSpec(
            num_scalar_prefetch=0,
            grid=(B, num_l),
            in_specs=[
                # x: one batch row, full C_in, TL lanes of L per step.  The
                # last L block may be ragged; its out-of-range lanes are
                # undefined but per-lane independent, and the matching
                # output columns are masked on writeback.
                pl.BlockSpec((None, C_in, TL), lambda b, l: (b, 0, l)),
                # W, bias: resident (same block every step).
                pl.BlockSpec((C_out, C_in), lambda b, l: (0, 0)),
                pl.BlockSpec((C_out, 1), lambda b, l: (0, 0)),
            ],
            out_specs=pl.BlockSpec((None, C_out, TL), lambda b, l: (b, 0, l)),
        ),
        compiler_params=pltpu.CompilerParams(
            # Both axes are independent -> shard across v7x's 2 TensorCores.
            dimension_semantics=("parallel", "parallel"),
            # Plenty for ~4.7 MiB of double-buffered tiles; safe on v7x's
            # 64 MiB physical VMEM as well as v5e/v6e.
            vmem_limit_bytes=32 * 1024 * 1024,
        ),
    )(x_ncl, w_scaled, b_scaled)
    return out


def init_sine_layer_params(key, in_features, out_features,
                           is_first=False, omega_0=30.0):
    """Deterministic init mirroring SineLayer.init_weights + Conv1d bias init."""
    k_w, k_b = jax.random.split(key)
    if is_first:
        bound_w = 1.0 / in_features
    else:
        bound_w = math.sqrt(6.0 / in_features) / omega_0
    weight = jax.random.uniform(
        k_w, (out_features, in_features), jnp.float32,
        minval=-bound_w, maxval=bound_w)
    # PyTorch Conv1d default bias init: U(-1/sqrt(fan_in), 1/sqrt(fan_in))
    bound_b = 1.0 / math.sqrt(in_features)
    bias = jax.random.uniform(
        k_b, (out_features,), jnp.float32, minval=-bound_b, maxval=bound_b)
    return weight, bias


def _reference(x, weight, bias, omega_0):
    # Faithful to torch.sin(omega_0 * Conv1d(k=1)(x)).
    return jnp.sin(omega_0 * (jnp.einsum("oi,bil->bol", weight, x)
                              + bias[None, :, None]))


if __name__ == "__main__":
    key = jax.random.PRNGKey(0)
    k_x1, k_p1, k_x2, k_p2 = jax.random.split(key, 4)
    omega_0 = 30.0

    # Test 1: small shape, single full-L tile per batch row (is_first init).
    B, C_in, L, C_out = 2, 4, 16, 32
    x1 = jax.random.normal(k_x1, (B, C_in, L), jnp.float32)
    w1, b1 = init_sine_layer_params(k_p1, C_in, C_out,
                                    is_first=True, omega_0=omega_0)
    out1 = jax.block_until_ready(sine_layer_forward(x1, w1, b1, omega_0))
    ref1 = _reference(x1, w1, b1, omega_0)
    assert out1.shape == (B, C_out, L)
    assert jnp.allclose(out1, ref1, atol=1e-4, rtol=1e-4)

    # Test 2: L not a multiple of the tile -> exercises the ragged last
    # block (no wrapper pad/slice; Pallas masks the OOB output columns).
    B2, L2 = 2, 1300
    x2 = jax.random.normal(k_x2, (B2, C_in, L2), jnp.float32)
    w2, b2 = init_sine_layer_params(k_p2, C_in, C_out,
                                    is_first=False, omega_0=omega_0)
    out2 = jax.block_until_ready(sine_layer_forward(x2, w2, b2, omega_0))
    ref2 = _reference(x2, w2, b2, omega_0)
    assert out2.shape == (B2, C_out, L2)
    assert jnp.allclose(out2, ref2, atol=1e-4, rtol=1e-4)

    print("KERNEL_OK")
</pallas_src>

<mosaic_0001>
module attributes {stable_mosaic.version = 11 : i64} {
  func.func @_sine_layer_kernel(%arg0: i32, %arg1: i32, %arg2: memref<1x4x16xf32, #tpu.memory_space<vmem>>, %arg3: memref<32x4xf32, #tpu.memory_space<vmem>>, %arg4: memref<32x1xf32, #tpu.memory_space<vmem>>, %arg5: memref<1x32x16xf32, #tpu.memory_space<vmem>>) attributes {dimension_semantics = [#tpu.dimension_semantics<parallel>, #tpu.dimension_semantics<parallel>], iteration_bounds = array<i64: 2, 1>, scalar_prefetch = 0 : i64, scratch_operands = 0 : i64, tpu.core_type = #tpu.core_type<tc>, window_params = [{transform_indices = @transform_0, window_bounds = array<i64: 1, 4, 16>}, {pipeline_mode = #tpu.pipeline_mode<synchronous>, transform_indices = @transform_1, window_bounds = array<i64: 32, 4>}, {pipeline_mode = #tpu.pipeline_mode<synchronous>, transform_indices = @transform_2, window_bounds = array<i64: 32, 1>}, {transform_indices = @transform_3, window_bounds = array<i64: 1, 32, 16>}]} {
    %c0 = arith.constant 0 : index
    %c0_0 = arith.constant 0 : index
    %0 = vector.load %arg3[%c0, %c0_0] : memref<32x4xf32, #tpu.memory_space<vmem>>, vector<32x4xf32>
    %c0_1 = arith.constant 0 : index
    %c0_2 = arith.constant 0 : index
    %c0_3 = arith.constant 0 : index
    %1 = vector.load %arg2[%c0_1, %c0_2, %c0_3] : memref<1x4x16xf32, #tpu.memory_space<vmem>>, vector<1x4x16xf32>
    %2 = vector.shape_cast %1 : vector<1x4x16xf32> to vector<4x16xf32>
    %cst = arith.constant dense<0.000000e+00> : vector<32x16xf32>
    %3 = tpu.matmul %0, %2, %cst {dimension_numbers = #tpu.dot_dimension_numbers<[1], [0], [0], [1], [0, 0, 1, 1], [], []>} : vector<32x4xf32>, vector<4x16xf32>, vector<32x16xf32> -> vector<32x16xf32>
    %c0_4 = arith.constant 0 : index
    %c0_5 = arith.constant 0 : index
    %4 = vector.load %arg4[%c0_4, %c0_5] : memref<32x1xf32, #tpu.memory_space<vmem>>, vector<32x1xf32>
    %5 = vector.broadcast %4 : vector<32x1xf32> to vector<32x16xf32>
    %6 = arith.addf %3, %5 : vector<32x16xf32>
    %cst_6 = arith.constant 0.318309873 : f32
    %7 = vector.broadcast %cst_6 : f32 to vector<32x16xf32>
    %8 = arith.mulf %6, %7 : vector<32x16xf32>
    %9 = math.roundeven %8 : vector<32x16xf32>
    %cst_7 = arith.constant 3.140625 : f32
    %10 = vector.broadcast %cst_7 : f32 to vector<32x16xf32>
    %11 = arith.mulf %9, %10 : vector<32x16xf32>
    %12 = arith.subf %6, %11 : vector<32x16xf32>
    %cst_8 = arith.constant 9.67653584E-4 : f32
    %13 = vector.broadcast %cst_8 : f32 to vector<32x16xf32>
    %14 = arith.mulf %9, %13 : vector<32x16xf32>
    %15 = arith.subf %12, %14 : vector<32x16xf32>
    %cst_9 = arith.constant 5.000000e-01 : f32
    %16 = vector.broadcast %cst_9 : f32 to vector<32x16xf32>
    %17 = arith.mulf %9, %16 : vector<32x16xf32>
    %18 = math.floor %17 : vector<32x16xf32>
    %cst_10 = arith.constant 2.000000e+00 : f32
    %19 = vector.broadcast %cst_10 : f32 to vector<32x16xf32>
    %20 = arith.mulf %19, %18 : vector<32x16xf32>
    %21 = arith.subf %9, %20 : vector<32x16xf32>
    %cst_11 = arith.constant 2.000000e+00 : f32
    %22 = vector.broadcast %cst_11 : f32 to vector<32x16xf32>
    %23 = arith.mulf %22, %21 : vector<32x16xf32>
    %cst_12 = arith.constant 1.000000e+00 : f32
    %24 = vector.broadcast %cst_12 : f32 to vector<32x16xf32>
    %25 = arith.subf %24, %23 : vector<32x16xf32>
    %26 = arith.mulf %15, %15 : vector<32x16xf32>
    %cst_13 = arith.constant -2.50521079E-8 : f32
    %27 = vector.broadcast %cst_13 : f32 to vector<32x16xf32>
    %28 = arith.mulf %27, %26 : vector<32x16xf32>
    %cst_14 = arith.constant 2.75573188E-6 : f32
    %29 = vector.broadcast %cst_14 : f32 to vector<32x16xf32>
    %30 = arith.addf %28, %29 : vector<32x16xf32>
    %31 = arith.mulf %30, %26 : vector<32x16xf32>
    %cst_15 = arith.constant -1.98412701E-4 : f32
    %32 = vector.broadcast %cst_15 : f32 to vector<32x16xf32>
    %33 = arith.addf %31, %32 : vector<32x16xf32>
    %34 = arith.mulf %33, %26 : vector<32x16xf32>
    %cst_16 = arith.constant 0.00833333377 : f32
    %35 = vector.broadcast %cst_16 : f32 to vector<32x16xf32>
    %36 = arith.addf %34, %35 : vector<32x16xf32>
    %37 = arith.mulf %36, %26 : vector<32x16xf32>
    %cst_17 = arith.constant -0.166666672 : f32
    %38 = vector.broadcast %cst_17 : f32 to vector<32x16xf32>
    %39 = arith.addf %37, %38 : vector<32x16xf32>
    %40 = arith.mulf %26, %39 : vector<32x16xf32>
    %41 = arith.mulf %15, %40 : vector<32x16xf32>
    %42 = arith.addf %15, %41 : vector<32x16xf32>
    %43 = arith.mulf %25, %42 : vector<32x16xf32>
    %c0_18 = arith.constant 0 : index
    %c0_19 = arith.constant 0 : index
    %c0_20 = arith.constant 0 : index
    %44 = vector.load %arg5[%c0_18, %c0_19, %c0_20] : memref<1x32x16xf32, #tpu.memory_space<vmem>>, vector<1x32x16xf32>
    %45 = vector.shape_cast %44 : vector<1x32x16xf32> to vector<32x16xf32>
    %46 = vector.shape_cast %43 : vector<32x16xf32> to vector<1x32x16xf32>
    tpu.vector_store %arg5[%c0_18, %c0_19, %c0_20], %46 {strides = array<i32>} : memref<1x32x16xf32, #tpu.memory_space<vmem>>, vector<1x32x16xf32>,
    return
  }
  func.func @transform_0(%arg0: i32, %arg1: i32) -> (i32, i32, i32) {
    %c0_i32 = arith.constant 0 : i32
    %c0_i32_0 = arith.constant 0 : i32
    return %arg0, %c0_i32, %arg1 : i32, i32, i32
  }
  func.func @transform_1(%arg0: i32, %arg1: i32) -> (i32, i32) {
    %c0_i32 = arith.constant 0 : i32
    %c0_i32_0 = arith.constant 0 : i32
    %c0_i32_1 = arith.constant 0 : i32
    return %c0_i32, %c0_i32_0 : i32, i32
  }
  func.func @transform_2(%arg0: i32, %arg1: i32) -> (i32, i32) {
    %c0_i32 = arith.constant 0 : i32
    %c0_i32_0 = arith.constant 0 : i32
    %c0_i32_1 = arith.constant 0 : i32
    return %c0_i32, %c0_i32_0 : i32, i32
  }
  func.func @transform_3(%arg0: i32, %arg1: i32) -> (i32, i32, i32) {
    %c0_i32 = arith.constant 0 : i32
    %c0_i32_0 = arith.constant 0 : i32
    return %arg0, %c0_i32, %arg1 : i32, i32, i32
  }
}

</mosaic_0001>

<llo_original>
// kernel: tpu_custom_call.1
$region0: #{tpu_custom_call.1}
  #allocation0 [shape = 'u32[]', space=smem, size = 0x4, offset = 0x4, fixed_abs, tag = 'smem constant byte address 0x4 - core index']
  #allocation1 [shape = 'u32[144,128]{1,0:T(1,128)}', space=vmem, size = 0x12000, scoped, tag = 'internal scratch']
  %s0 = inlined_call_operand.vmem [shape: f32[2,4,16], index: 0, kind: input, shape index: {}]
  %s1 = inlined_call_operand.vmem [shape: f32[32,4], index: 1, kind: input, shape index: {}]
  %s2 = inlined_call_operand.vmem [shape: f32[32,1], index: 2, kind: input, shape index: {}]
  %s3 = inlined_call_operand.vmem [shape: f32[2,32,16], index: 3, kind: output, shape index: {}]
  %s4 = sld [smem:[#allocation0]]
  $region45: #{tpu_custom_call.1} parent=0
    _
  %s6 = ssub.s32 1, %s4
  %s7 = scalar_select 0, %s6, %s4
  loop: start=0, step=1, limit=4
  $region2: #{tpu_custom_call.1} parent=0 // loop_pre_header
    _
  $region3: #{tpu_custom_call.1} parent=0 // loop_header
    %s9 = sphi 0, %s13
    %p10 = scmp.ge.s32.totalorder %s9, 4
    %s16 = sphi 0, %s28
    %s17 = sphi 0, %s24
    %s18 = sphi 0, %s16
    %s19 = sphi 0, %s17
    %s20 = sphi 0, %s18
    %s21 = sphi 0, %s19
    %s33 = sphi 0, %s35
    %s36 = sphi 0, %s33
    %s37 = sphi 0, %s36
    %s53 = sphi 0, %s37
    %s57 = sphi 0, %s57
    %s59 = sphi 0, %s57
    %s60 = sphi 0, %s59
    %s74 = sphi 0, %s60
    %s78 = sphi 0, %s78
    %s80 = sphi 0, %s78
    %s81 = sphi 0, %s80
    %s95 = sphi 0, %s81
    %s103 = sphi 0, %s105
    %s106 = sphi 0, %s103
    %s107 = sphi 0, %s106
    %s123 = sphi 0, %s107
  $region4: #{tpu_custom_call.1} parent=0 // loop_header_branch
    %12 = sbr.rel (%p10) target = $region8
  $region5: #{tpu_custom_call.1} parent=0 // loop_body
    %s14 = ssub.s32 %s9, 1
    %s15 = ssub.s32 %s9, 2
    %s22 = sadd.s32 1, %s17
    %p23 = scmp.ge.s32.totalorder %s22, 1
    %s24 = scalar_select %p23, 0, %s22
    %s25 = sadd.s32 1, %s16
    %s26 = scalar_select %p23, %s25, %s16
    %p27 = scmp.ge.s32.totalorder %s26, 2
    %s28 = scalar_select %p27, 0, %s26
    %s29 = ssub.s32 %s16, %s28
    %s30 = ssub.s32 %s17, %s24
    %s31 = sor.u32 %s29, %s30
    %p32 = scmp.eq.s32.totalorder %s31, 0
    %s34 = sadd.s32 %s33, 1
    %s35 = scalar_select %p32, %s33, %s34
    %p38 = pneg %p32
    %p39 = scmp.eq.s32.totalorder %s9, 1
    %p40 = por %p38, %p39
    %p41 = scmp.ne.s32.totalorder %s33, %s36
    %p42 = scmp.eq.s32.totalorder %s9, 0
    %p43 = por %p41, %p42
    %p44 = scmp.ne.s32.totalorder %s33, %s36
    %p45 = scmp.eq.s32.totalorder %s14, 1
    %p46 = por %p44, %p45
    %p47 = scmp.ne.s32.totalorder %s36, %s37
    %p48 = scmp.eq.s32.totalorder %s14, 0
    %p49 = por %p47, %p48
    %p50 = scmp.ne.s32.totalorder %s36, %s37
    %p51 = scmp.eq.s32.totalorder %s15, 1
    %p52 = por %p50, %p51
    %p54 = scmp.ne.s32.totalorder %s37, %s53
    %p55 = scmp.eq.s32.totalorder %s15, 0
    %p56 = por %p54, %p55
    %s58 = sadd.s32 %s57, 1
    %p61 = scmp.eq.s32.totalorder %s9, 1
    %p62 = scmp.ne.s32.totalorder %s57, %s59
    %p63 = scmp.eq.s32.totalorder %s9, 0
    %p64 = por %p62, %p63
    %p65 = scmp.ne.s32.totalorder %s57, %s59
    %p66 = scmp.eq.s32.totalorder %s14, 1
    %p67 = por %p65, %p66
    %p68 = scmp.ne.s32.totalorder %s59, %s60
    %p69 = scmp.eq.s32.totalorder %s14, 0
    %p70 = por %p68, %p69
    %p71 = scmp.ne.s32.totalorder %s59, %s60
    %p72 = scmp.eq.s32.totalorder %s15, 1
    %p73 = por %p71, %p72
    %p75 = scmp.ne.s32.totalorder %s60, %s74
    %p76 = scmp.eq.s32.totalorder %s15, 0
    %p77 = por %p75, %p76
    %s79 = sadd.s32 %s78, 1
    %p82 = scmp.eq.s32.totalorder %s9, 1
    %p83 = scmp.ne.s32.totalorder %s78, %s80
    %p84 = scmp.eq.s32.totalorder %s9, 0
    %p85 = por %p83, %p84
    %p86 = scmp.ne.s32.totalorder %s78, %s80
    %p87 = scmp.eq.s32.totalorder %s14, 1
    %p88 = por %p86, %p87
    %p89 = scmp.ne.s32.totalorder %s80, %s81
    %p90 = scmp.eq.s32.totalorder %s14, 0
    %p91 = por %p89, %p90
    %p92 = scmp.ne.s32.totalorder %s80, %s81
    %p93 = scmp.eq.s32.totalorder %s15, 1
    %p94 = por %p92, %p93
    %p96 = scmp.ne.s32.totalorder %s81, %s95
    %p97 = scmp.eq.s32.totalorder %s15, 0
    %p98 = por %p96, %p97
    %s99 = ssub.s32 %s16, %s28
    %s100 = ssub.s32 %s17, %s24
    %s101 = sor.u32 %s99, %s100
    %p102 = scmp.eq.s32.totalorder %s101, 0
    %s104 = sadd.s32 %s103, 1
    %s105 = scalar_select %p102, %s103, %s104
    %p108 = pneg %p102
    %p109 = scmp.eq.s32.totalorder %s9, 1
    %p110 = por %p108, %p109
    %p111 = scmp.ne.s32.totalorder %s103, %s106
    %p112 = scmp.eq.s32.totalorder %s9, 0
    %p113 = por %p111, %p112
    %p114 = scmp.ne.s32.totalorder %s103, %s106
    %p115 = scmp.eq.s32.totalorder %s14, 1
    %p116 = por %p114, %p115
    %p117 = scmp.ne.s32.totalorder %s106, %s107
    %p118 = scmp.eq.s32.totalorder %s14, 0
    %p119 = por %p117, %p118
    %p120 = scmp.ne.s32.totalorder %s106, %s107
    %p121 = scmp.eq.s32.totalorder %s15, 1
    %p122 = por %p120, %p121
    %p124 = scmp.ne.s32.totalorder %s107, %s123
    %p125 = scmp.eq.s32.totalorder %s15, 0
    %p126 = por %p124, %p125
    %p127 = scmp.le.s32.totalorder 1, %s9
    %p128 = scmp.lt.s32.totalorder %s9, 3
    %p129 = pnand %p127, %p128
    %p130 = pneg %p129
    // Predicated region
    $region9: #{tpu_custom_call.1} parent=5 // pred_check
      _
    $region10: #{tpu_custom_call.1} parent=5 // pred_check_branch
      %132 = sbr.rel (%p129) target = $region12
    $region11: #{tpu_custom_call.1} parent=5 // pred_region
      %s133 = ssub.s32 %s9, 1
      // Predicated region
      $region13: #{tpu_custom_call.1} parent=11 // pred_check
        %p134 = pneg %p70
      $region14: #{tpu_custom_call.1} parent=11 // pred_check_branch
        %136 = sbr.rel (%p134) target = $region16
      $region15: #{tpu_custom_call.1} parent=11 // pred_region
        _
      $region16: #{tpu_custom_call.1} parent=11 // pred_fallthru
        _
      // Predicated region
      $region17: #{tpu_custom_call.1} parent=11 // pred_check
        %p137 = pneg %p91
      $region18: #{tpu_custom_call.1} parent=11 // pred_check_branch
        %139 = sbr.rel (%p137) target = $region20
      $region19: #{tpu_custom_call.1} parent=11 // pred_region
        _
      $region20: #{tpu_custom_call.1} parent=11 // pred_fallthru
        _
    $region12: #{tpu_custom_call.1} parent=5 // pred_fallthru
      _
    %p140 = scmp.lt.s32.totalorder %s9, 2
    // Predicated region
    $region21: #{tpu_custom_call.1} parent=5 // pred_check
      %p141 = pneg %p140
    $region22: #{tpu_custom_call.1} parent=5 // pred_check_branch
      %143 = sbr.rel (%p141) target = $region24
    $region23: #{tpu_custom_call.1} parent=5 // pred_region
      // Predicated region
      $region25: #{tpu_custom_call.1} parent=23 // pred_check
        %p144 = pneg %p43
      $region26: #{tpu_custom_call.1} parent=23 // pred_check_branch
        %146 = sbr.rel (%p144) target = $region28
      $region27: #{tpu_custom_call.1} parent=23 // pred_region
        %p147 = scmp.lt.s32.totalorder %s16, 1
        %s148 = scalar_select %p147, %s16, 1
        %p149 = scmp.lt.s32.totalorder %s17, 0
        %s150 = scalar_select %p149, %s17, 0
        %s151 = sadd.s32 %s150, %s148
        %s152 = smul.addr %s151, 4
        %s153 = scalar_lea.vmem %s0, %s152
      $region28: #{tpu_custom_call.1} parent=23 // pred_fallthru
        _
    $region24: #{tpu_custom_call.1} parent=5 // pred_fallthru
      _
    %p154 = scmp.le.s32.totalorder 1, %s9
    %p155 = scmp.lt.s32.totalorder %s9, 3
    %p156 = pnand %p154, %p155
    %p157 = pneg %p156
    // Predicated region
    $region29: #{tpu_custom_call.1} parent=5 // pred_check
      _
    $region30: #{tpu_custom_call.1} parent=5 // pred_check_branch
      %159 = sbr.rel (%p156) target = $region32
    $region31: #{tpu_custom_call.1} parent=5 // pred_region
      %s160 = ssub.s32 %s9, 1
      %p161 = scmp.lt.s32.totalorder %s18, 1
      %s162 = scalar_select %p161, %s18, 1
      %p163 = scmp.lt.s32.totalorder %s19, 0
      %s164 = scalar_select %p163, %s19, 0
      %s165 = sadd.s32 %s164, %s162
      %s166 = smul.addr %s165, 4
      %s167 = scalar_lea.vmem %s0, %s166
      %p168 = pneg %p49
      %p169 = pneg %p46
      %p170 = pneg %p70
      %p171 = pneg %p67
      %p172 = pneg %p91
      %p173 = pneg %p88
      %p174 = pneg %p119
      %p175 = pneg %p116
      %p176 = scmp.lt.s32.totalorder %s18, 1
      %s177 = scalar_select %p176, %s18, 1
      %p178 = scmp.lt.s32.totalorder %s19, 0
      %s179 = scalar_select %p178, %s19, 0
      %s180 = smul.addr %s177, 4
      %s181 = sadd.s32 %s179, %s180
      %s182 = smul.addr %s181, 8
      %s183 = scalar_lea.vmem %s3, %s182
      %p184 = scmp.lt.s32.totalorder %s18, 1
      %s185 = scalar_select %p184, %s18, 1
      %p186 = scmp.lt.s32.totalorder %s19, 0
      %s187 = scalar_select %p186, %s19, 0
      %s188 = sadd.s32 %s187, %s185
      %s189 = smul.addr %s188, 4
      %s190 = scalar_lea.vmem %s0, %s189
      %p191 = scmp.lt.s32.totalorder %s18, 1
      %s192 = scalar_select %p191, %s18, 1
      %p193 = scmp.lt.s32.totalorder %s19, 0
      %s194 = scalar_select %p193, %s19, 0
      %s195 = smul.addr %s192, 4
      %s196 = sadd.s32 %s194, %s195
      %s197 = smul.addr %s196, 8
      %s198 = scalar_lea.vmem %s3, %s197
      %v199 = vld [vmem:[%s1] sm:$0xff]
      %v200 = vld [vmem:[%s1 + $0x8] sm:$0xff]
      %v201 = vld [vmem:[%s1 + $0x10] sm:$0xff]
      %v202 = vld [vmem:[%s1 + $0x18] sm:$0xff]
      %v203 = vld [vmem:[%s190] sm:$0xf]
      %v204 = vld [vmem:[%s2] sm:$0xff]
      %v205 = vld [vmem:[%s2 + $0x8] sm:$0xff]
      %v206 = vld [vmem:[%s2 + $0x10] sm:$0xff]
      %v207 = vld [vmem:[%s2 + $0x18] sm:$0xff]
      %209 = vset.pattern.permute.xlu0 0
      %210 = vperm.xlu0 %209, %v204
      %v211 = vpop.permute.xlu0 %210
      %214 = vset.pattern.permute.xlu0 0
      %215 = vperm.xlu0 %214, %v205
      %v216 = vpop.permute.xlu0 %215
      %219 = vset.pattern.permute.xlu0 0
      %220 = vperm.xlu0 %219, %v206
      %v221 = vpop.permute.xlu0 %220
      %224 = vset.pattern.permute.xlu0 0
      %225 = vperm.xlu0 %224, %v207
      %v226 = vpop.permute.xlu0 %225
      %vm228 = vcmask 31744
      %v230 = vsel %vm228, %v199, 0
      %v233 = vsel %vm228, %v200, 0
      %v236 = vsel %vm228, %v201, 0
      %v239 = vsel %vm228, %v202, 0
      %vm241 = vcmask 1043456
      %v243 = vsel %vm241, %v203, 0
      %245 = vmatprep.subr.mxu0 0.0
      %246 = vmatpush1.msra.mxu0 0.0
      %247 = vmatprep.subr.mxu0 0.0
      %248 = vmatpush1.msra.mxu0 0.0
      %249 = vmatprep.subr.mxu0 0.0
      %250 = vmatpush1.msra.mxu0 0.0
      %251 = vmatprep.subr.mxu0 0.0
      %252 = vmatpush1.msra.mxu0 0.0
      %253 = vmatprep.subr.mxu0 0.0
      %254 = vmatpush1.msra.mxu0 0.0
      %255 = vmatprep.subr.mxu0 0.0
      %256 = vmatpush1.msra.mxu0 0.0
      %257 = vmatprep.subr.mxu0 0.0
      %258 = vmatpush1.msra.mxu0 0.0
      %259 = vmatprep.subr.mxu0 0.0
      %260 = vmatpush1.msra.mxu0 0.0
      %261 = vmatprep.subr.mxu0 0.0
      %262 = vmatpush1.msra.mxu0 0.0
      %263 = vmatprep.subr.mxu0 0.0
      %264 = vmatpush1.msra.mxu0 0.0
      %265 = vmatprep.subr.mxu0 0.0
      %266 = vmatpush1.msra.mxu0 0.0
      %267 = vmatprep.subr.mxu0 0.0
      %268 = vmatpush1.msra.mxu0 0.0
      %269 = vmatprep.subr.mxu0 0.0
      %270 = vmatpush1.msra.mxu0 0.0
      %271 = vmatprep.subr.mxu0 0.0
      %272 = vmatpush1.msra.mxu0 0.0
      %273 = vmatprep.subr.mxu0 0.0
      %274 = vmatpush1.msra.mxu0 0.0
      %275 = vmatprep.subr.mxu0 0.0
      %276 = vmatpush1.msra.mxu0 %v243
      %277 = vmatprep.subr.mxu0 0.0
      %278 = vmatpush2.msra.mxu0 0.0
      %279 = vmatprep.subr.mxu0 0.0
      %280 = vmatpush2.msra.mxu0 0.0
      %281 = vmatprep.subr.mxu0 0.0
      %282 = vmatpush2.msra.mxu0 0.0
      %283 = vmatprep.subr.mxu0 0.0
      %284 = vmatpush2.msra.mxu0 0.0
      %285 = vmatprep.subr.mxu0 0.0
      %286 = vmatpush2.msra.mxu0 0.0
      %287 = vmatprep.subr.mxu0 0.0
      %288 = vmatpush2.msra.mxu0 0.0
      %289 = vmatprep.subr.mxu0 0.0
      %290 = vmatpush2.msra.mxu0 0.0
      %291 = vmatprep.subr.mxu0 0.0
      %292 = vmatpush2.msra.mxu0 0.0
      %293 = vmatprep.subr.mxu0 0.0
      %294 = vmatpush2.msra.mxu0 0.0
      %295 = vmatprep.subr.mxu0 0.0
      %296 = vmatpush2.msra.mxu0 0.0
      %297 = vmatprep.subr.mxu0 0.0
      %298 = vmatpush2.msra.mxu0 0.0
      %299 = vmatprep.subr.mxu0 0.0
      %300 = vmatpush2.msra.mxu0 0.0
      %301 = vmatprep.subr.mxu0 0.0
      %302 = vmatpush2.msra.mxu0 0.0
      %303 = vmatprep.subr.mxu0 0.0
      %304 = vmatpush2.msra.mxu0 0.0
      %305 = vmatprep.subr.mxu0 0.0
      %306 = vmatpush2.msra.mxu0 0.0
      %307 = vmatprep.subr.mxu0 0.0
      %308 = vmatpush2.msra.mxu0 0.0
      %309 = vmatprep.mubr.f32.mxu0 0.0
      %310 = vmatmul.mubr.f32.gmra.mxu0 %v230
      %v311 = vpop.f32.mrf.mxu0
      %v312 = vadd.f32 %v211, %v311
      %v313 = vpop.f32.mrf.mxu0
      %314 = vmatprep.mubr.f32.mxu0 0.0
      %315 = vmatmul.mubr.f32.gmra.mxu0 %v233
      %v316 = vpop.f32.mrf.mxu0
      %v317 = vadd.f32 %v216, %v316
      %v318 = vpop.f32.mrf.mxu0
      %319 = vmatprep.mubr.f32.mxu0 0.0
      %320 = vmatmul.mubr.f32.gmra.mxu0 %v236
      %v321 = vpop.f32.mrf.mxu0
      %v322 = vadd.f32 %v221, %v321
      %v323 = vpop.f32.mrf.mxu0
      %324 = vmatprep.mubr.f32.mxu0 0.0
      %325 = vmatmul.mubr.f32.gmra.mxu0 %v239
      %v326 = vpop.f32.mrf.mxu0
      %v327 = vadd.f32 %v226, %v326
      %v328 = vpop.f32.mrf.mxu0
      %329 = vdwg.mxu0
      %v330 = vmul.f32 %v312, 0.31830987
      %v331 = vmul.f32 %v317, 0.31830987
      %v332 = vmul.f32 %v322, 0.31830987
      %v333 = vmul.f32 %v327, 0.31830987
      %v334 = vround.ne.pseudo %v330
      %v335 = vround.ne.pseudo %v331
      %v336 = vround.ne.pseudo %v332
      %v337 = vround.ne.pseudo %v333
      %v338 = vmul.f32 %v334, 3.140625
      %v339 = vmul.f32 %v335, 3.140625
      %v340 = vmul.f32 %v336, 3.140625
      %v341 = vmul.f32 %v337, 3.140625
      %v342 = vsub.f32 %v312, %v338
      %v343 = vsub.f32 %v317, %v339
      %v344 = vsub.f32 %v322, %v340
      %v345 = vsub.f32 %v327, %v341
      %v346 = vmul.f32 %v334, 0.0009676536
      %v347 = vmul.f32 %v335, 0.0009676536
      %v348 = vmul.f32 %v336, 0.0009676536
      %v349 = vmul.f32 %v337, 0.0009676536
      %v350 = vsub.f32 %v342, %v346
      %v351 = vsub.f32 %v343, %v347
      %v352 = vsub.f32 %v344, %v348
      %v353 = vsub.f32 %v345, %v349
      %v354 = vmul.f32 %v334, 0.5
      %v355 = vmul.f32 %v335, 0.5
      %v356 = vmul.f32 %v336, 0.5
      %v357 = vmul.f32 %v337, 0.5
      %v358 = vfloor.f32 %v354
      %v359 = vfloor.f32 %v355
      %v360 = vfloor.f32 %v356
      %v361 = vfloor.f32 %v357
      %v362 = vmul.f32 %v358, 2.0
      %v363 = vmul.f32 %v359, 2.0
      %v364 = vmul.f32 %v360, 2.0
      %v365 = vmul.f32 %v361, 2.0
      %v366 = vsub.f32 %v334, %v362
      %v367 = vsub.f32 %v335, %v363
      %v368 = vsub.f32 %v336, %v364
      %v369 = vsub.f32 %v337, %v365
      %v370 = vmul.f32 %v366, 2.0
      %v371 = vmul.f32 %v367, 2.0
      %v372 = vmul.f32 %v368, 2.0
      %v373 = vmul.f32 %v369, 2.0
      %v374 = vsub.f32 1.0, %v370
      %v375 = vsub.f32 1.0, %v371
      %v376 = vsub.f32 1.0, %v372
      %v377 = vsub.f32 1.0, %v373
      %v378 = vmul.f32 %v350, %v350
      %v379 = vmul.f32 %v351, %v351
      %v380 = vmul.f32 %v352, %v352
      %v381 = vmul.f32 %v353, %v353
      %v382 = vmul.f32 %v378, -2.5052108e-08
      %v383 = vmul.f32 %v379, -2.5052108e-08
      %v384 = vmul.f32 %v380, -2.5052108e-08
      %v385 = vmul.f32 %v381, -2.5052108e-08
      %v386 = vadd.f32 %v382, 2.7557319e-06
      %v387 = vadd.f32 %v383, 2.7557319e-06
      %v388 = vadd.f32 %v384, 2.7557319e-06
      %v389 = vadd.f32 %v385, 2.7557319e-06
      %v390 = vmul.f32 %v386, %v378
      %v391 = vmul.f32 %v387, %v379
      %v392 = vmul.f32 %v388, %v380
      %v393 = vmul.f32 %v389, %v381
      %v394 = vadd.f32 %v390, -0.0001984127
      %v395 = vadd.f32 %v391, -0.0001984127
      %v396 = vadd.f32 %v392, -0.0001984127
      %v397 = vadd.f32 %v393, -0.0001984127
      %v398 = vmul.f32 %v394, %v378
      %v399 = vmul.f32 %v395, %v379
      %v400 = vmul.f32 %v396, %v380
      %v401 = vmul.f32 %v397, %v381
      %v402 = vadd.f32 %v398, 0.008333334
      %v403 = vadd.f32 %v399, 0.008333334
      %v404 = vadd.f32 %v400, 0.008333334
      %v405 = vadd.f32 %v401, 0.008333334
      %v406 = vmul.f32 %v402, %v378
      %v407 = vmul.f32 %v403, %v379
      %v408 = vmul.f32 %v404, %v380
      %v409 = vmul.f32 %v405, %v381
      %v410 = vadd.f32 %v406, -0.16666667
      %v411 = vadd.f32 %v407, -0.16666667
      %v412 = vadd.f32 %v408, -0.16666667
      %v413 = vadd.f32 %v409, -0.16666667
      %v414 = vmul.f32 %v378, %v410
      %v415 = vmul.f32 %v379, %v411
      %v416 = vmul.f32 %v380, %v412
      %v417 = vmul.f32 %v381, %v413
      %v418 = vmul.f32 %v350, %v414
      %v419 = vmul.f32 %v351, %v415
      %v420 = vmul.f32 %v352, %v416
      %v421 = vmul.f32 %v353, %v417
      %v422 = vadd.f32 %v350, %v418
      %v423 = vadd.f32 %v351, %v419
      %v424 = vadd.f32 %v352, %v420
      %v425 = vadd.f32 %v353, %v421
      %v426 = vmul.f32 %v374, %v422
      %v427 = vmul.f32 %v375, %v423
      %v428 = vmul.f32 %v376, %v424
      %v429 = vmul.f32 %v377, %v425
      %vm430 = vcmask 130048
      %431 = vst.msk [vmem:[%s198] sm:$0xff] %vm430, %v426
      %432 = vst.msk [vmem:[%s198 + $0x8] sm:$0xff] %vm430, %v427
      %433 = vst.msk [vmem:[%s198 + $0x10] sm:$0xff] %vm430, %v428
      %434 = vst.msk [vmem:[%s198 + $0x18] sm:$0xff] %vm430, %v429
      %p435 = scmp.lt.s32.totalorder %s18, 1
      %s436 = scalar_select %p435, %s18, 1
      %p437 = scmp.lt.s32.totalorder %s19, 0
      %s438 = scalar_select %p437, %s19, 0
      %s439 = smul.addr %s436, 4
      %s440 = sadd.s32 %s438, %s439
      %s441 = smul.addr %s440, 8
      %s442 = scalar_lea.vmem %s3, %s441
      // Predicated region
      $region33: #{tpu_custom_call.1} parent=31 // pred_check
        %p443 = pneg %p116
      $region34: #{tpu_custom_call.1} parent=31 // pred_check_branch
        %445 = sbr.rel (%p443) target = $region36
      $region35: #{tpu_custom_call.1} parent=31 // pred_region
        _
      $region36: #{tpu_custom_call.1} parent=31 // pred_fallthru
        _
    $region32: #{tpu_custom_call.1} parent=5 // pred_fallthru
      _
    %p446 = scmp.le.s32.totalorder 2, %s9
    // Predicated region
    $region37: #{tpu_custom_call.1} parent=5 // pred_check
      %p447 = pneg %p446
    $region38: #{tpu_custom_call.1} parent=5 // pred_check_branch
      %449 = sbr.rel (%p447) target = $region40
    $region39: #{tpu_custom_call.1} parent=5 // pred_region
      %s450 = ssub.s32 %s9, 2
      // Predicated region
      $region41: #{tpu_custom_call.1} parent=39 // pred_check
        %p451 = pneg %p122
      $region42: #{tpu_custom_call.1} parent=39 // pred_check_branch
        %453 = sbr.rel (%p451) target = $region44
      $region43: #{tpu_custom_call.1} parent=39 // pred_region
        %p454 = scmp.lt.s32.totalorder %s20, 1
        %s455 = scalar_select %p454, %s20, 1
        %p456 = scmp.lt.s32.totalorder %s21, 0
        %s457 = scalar_select %p456, %s21, 0
        %s458 = smul.addr %s455, 4
        %s459 = sadd.s32 %s457, %s458
        %s460 = smul.addr %s459, 8
        %s461 = scalar_lea.vmem %s3, %s460
      $region44: #{tpu_custom_call.1} parent=39 // pred_fallthru
        _
    $region40: #{tpu_custom_call.1} parent=5 // pred_fallthru
      _
  $region6: #{tpu_custom_call.1} parent=0 // loop_footer
    %s13 = sadd.s32 1, %s9
  $region7: #{tpu_custom_call.1} parent=0 // loop_footer_branch
    %8 = sbr.rel target = $region3
  $region8: #{tpu_custom_call.1} parent=0 // loop_exit
    _

</llo_original>
